<compile_context>
chip_gen: v5e
topology: v5e:2x2
jax: 0.10.0
libtpu: 0.0.40
codegen_flags: <defaults>
</compile_context>

<pallas_src>
import jax
import jax.numpy as jnp
import numpy as np
from jax.experimental import pallas as pl
from jax.experimental.pallas import tpu as pltpu


def fused_rnn_kernel(xs_ref, h0_ref,
                     wx_ref, wh_ref, wfo_ref, b_ref, bo_ref,
                     out_ref, hid_ref,
                     h_scratch):
    t = pl.program_id(0)

    # Initialize the VMEM-resident hidden state on the first timestep only.
    @pl.when(t == 0)
    def _():
        h_scratch[...] = h0_ref[...]

    x = xs_ref[0]            # (B, D_in)  -- this step's input slice
    h = h_scratch[...]       # (B, R)     -- carried hidden state (VMEM resident)

    # Both projections at once: [x, h] @ [W_i2h^T | W_i2f^T] + [b_i2h | b_i2f]
    # == x @ Wx_all + h @ Wh_all + b_all  -> (B, R + H)
    pre = (jnp.dot(x, wx_ref[...], preferred_element_type=jnp.float32)
           + jnp.dot(h, wh_ref[...], preferred_element_type=jnp.float32)
           + b_ref[...])
    act = jnp.maximum(pre, 0.0)            # fused relu of new_hidden and fc1

    r = h_scratch.shape[1]
    new_h = act[:, :r]                     # zero-lane-offset slice: new hidden state

    # fc1tooutput (out_features == 1): VPU multiply + lane reduction against a
    # zero-padded weight row (zeros over the hidden lanes), so fc1 is never
    # re-packed; scalar bias comes from SMEM.
    logit = jnp.sum(act * wfo_ref[...], axis=-1, keepdims=True) + bo_ref[0, 0]
    out = jax.nn.sigmoid(logit)            # (B, 1), EUP

    # Carry hidden state and write this step's outputs.
    h_scratch[...] = new_h
    hid_ref[0] = new_h.astype(hid_ref.dtype)
    out_ref[0] = out.astype(out_ref.dtype)


def prepare_params(params, d_in):
    """One-time param prep (transposes / concats / reshapes), hoisted out of the hot path."""
    r = params["w_i2h"].shape[0]
    h = params["w_i2f"].shape[0]
    # (D_in + R, R + H): both projection weights fused along the output-feature axis.
    w_all = jnp.concatenate([params["w_i2h"].T, params["w_i2f"].T], axis=1)
    b_all = jnp.concatenate([params["b_i2h"], params["b_i2f"]]).reshape(1, r + h)
    # Output weight row padded with zeros over the hidden lanes -> reduce over (R + H).
    wfo_pad = jnp.concatenate(
        [jnp.zeros((1, r), jnp.float32), params["w_f2o"].reshape(1, h)], axis=1)
    return dict(
        wx=w_all[:d_in, :],                 # (D_in, R + H)
        wh=w_all[d_in:, :],                 # (R,    R + H)
        wfo=wfo_pad,                        # (1,    R + H)
        b=b_all,                            # (1,    R + H)
        bo=params["b_f2o"].reshape(1, 1),   # scalar, lives in SMEM
    )


@jax.jit
def rnn_scan(xs, h0, prepped):
    """Run T fused RNN steps in one pallas_call.

    xs: (T, B, D_in) f32, h0: (B, R) f32.
    Returns (outputs (T, B, 1), hiddens (T, B, R)).
    """
    T, B, D_in = xs.shape
    R = h0.shape[1]
    RH = prepped["wx"].shape[1]

    const2 = lambda t: (0, 0)  # weights/biases: same block every step -> DMA'd once
    in_specs = [
        pl.BlockSpec((1, B, D_in), lambda t: (t, 0, 0)),       # xs (per-step slice)
        pl.BlockSpec((B, R), const2),                          # h0
        pl.BlockSpec((D_in, RH), const2),                      # wx  (fused)
        pl.BlockSpec((R, RH), const2),                         # wh  (fused)
        pl.BlockSpec((1, RH), const2),                         # wfo (zero-padded row)
        pl.BlockSpec((1, RH), const2),                         # b   (fused bias)
        pl.BlockSpec(memory_space=pltpu.MemorySpace.SMEM),     # b_f2o scalar
    ]
    out_specs = (
        pl.BlockSpec((1, B, 1), lambda t: (t, 0, 0)),
        pl.BlockSpec((1, B, R), lambda t: (t, 0, 0)),
    )
    out_shape = (
        jax.ShapeDtypeStruct((T, B, 1), jnp.float32),   # per-step output
        jax.ShapeDtypeStruct((T, B, R), jnp.float32),   # per-step hidden
    )
    return pl.pallas_call(
        fused_rnn_kernel,
        out_shape=out_shape,
        grid=(T,),
        in_specs=in_specs,
        out_specs=out_specs,
        scratch_shapes=[pltpu.VMEM((B, R), jnp.float32)],
        compiler_params=pltpu.CompilerParams(
            dimension_semantics=("arbitrary",)),   # time axis is a recurrence
    )(xs, h0,
      prepped["wx"], prepped["wh"], prepped["wfo"], prepped["b"], prepped["bo"])


def one_step_rnn(x, hidden, prepped):
    """Exact module forward: x (B, D_in), hidden (B, R) -> (output (B,1), new_hidden (B,R))."""
    outs, hids = rnn_scan(x[None], hidden, prepped)
    return outs[0], hids[0]


def _step_reference(params, h, x):
    combined = jnp.concatenate([x, h], axis=1)
    new_h = jax.nn.relu(combined @ params["w_i2h"].T + params["b_i2h"])
    fc1 = jax.nn.relu(combined @ params["w_i2f"].T + params["b_i2f"])
    out = jax.nn.sigmoid(fc1 @ params["w_f2o"].T + params["b_f2o"])
    return new_h, (out, new_h)


if __name__ == "__main__":
    # Small, deterministic problem size consistent with the module's forward.
    B, D_in, R, H, T = 2, 4, 32, 32, 8

    key = jax.random.PRNGKey(0)
    ks = jax.random.split(key, 8)

    # Deterministic "PyTorch-Linear-style" uniform init (synthetic weights).
    def lin_init(kw, kb, out_f, in_f):
        bound = 1.0 / np.sqrt(in_f)
        w = jax.random.uniform(kw, (out_f, in_f), jnp.float32, -bound, bound)
        b = jax.random.uniform(kb, (out_f,), jnp.float32, -bound, bound)
        return w, b

    w_i2h, b_i2h = lin_init(ks[0], ks[1], R, D_in + R)
    w_i2f, b_i2f = lin_init(ks[2], ks[3], H, D_in + R)
    w_f2o, b_f2o = lin_init(ks[4], ks[5], 1, H)
    params = dict(w_i2h=w_i2h, b_i2h=b_i2h,
                  w_i2f=w_i2f, b_i2f=b_i2f,
                  w_f2o=w_f2o, b_f2o=b_f2o)

    prepped = prepare_params(params, D_in)   # one-time, outside the hot path

    xs = jax.random.normal(ks[6], (T, B, D_in), jnp.float32)
    h0 = jax.random.normal(ks[7], (B, R), jnp.float32)

    # Fused T-step run (one pallas_call, hidden resident in VMEM).
    outs, hids = rnn_scan(xs, h0, prepped)
    outs, hids = jax.block_until_ready((outs, hids))

    # Pure-JAX reference: the module forward applied sequentially.
    _, (ref_outs, ref_hids) = jax.lax.scan(
        lambda h, x: _step_reference(params, h, x), h0, xs)
    np.testing.assert_allclose(np.asarray(outs), np.asarray(ref_outs),
                               rtol=1e-5, atol=1e-5)
    np.testing.assert_allclose(np.asarray(hids), np.asarray(ref_hids),
                               rtol=1e-5, atol=1e-5)

    # Single-step check: literal OneStepRNN.forward(x, hidden).
    out1, h1 = one_step_rnn(xs[0], h0, prepped)
    out1, h1 = jax.block_until_ready((out1, h1))
    np.testing.assert_allclose(np.asarray(out1), np.asarray(ref_outs[0]),
                               rtol=1e-5, atol=1e-5)
    np.testing.assert_allclose(np.asarray(h1), np.asarray(ref_hids[0]),
                               rtol=1e-5, atol=1e-5)

    print("KERNEL_OK")
</pallas_src>

<mosaic_0001>
module attributes {stable_mosaic.version = 11 : i64} {
  func.func @fused_rnn_kernel(%arg0: i32, %arg1: memref<1x2x4xf32, #tpu.memory_space<vmem>>, %arg2: memref<2x32xf32, #tpu.memory_space<vmem>>, %arg3: memref<4x64xf32, #tpu.memory_space<vmem>>, %arg4: memref<32x64xf32, #tpu.memory_space<vmem>>, %arg5: memref<1x64xf32, #tpu.memory_space<vmem>>, %arg6: memref<1x64xf32, #tpu.memory_space<vmem>>, %arg7: memref<1x1xf32, #tpu.memory_space<smem>>, %arg8: memref<1x2x1xf32, #tpu.memory_space<vmem>>, %arg9: memref<1x2x32xf32, #tpu.memory_space<vmem>>, %arg10: memref<2x32xf32, #tpu.memory_space<vmem>>) attributes {dimension_semantics = [#tpu.dimension_semantics<arbitrary>], iteration_bounds = array<i64: 8>, scalar_prefetch = 0 : i64, scratch_operands = 1 : i64, tpu.core_type = #tpu.core_type<tc>, window_params = [{transform_indices = @transform_0, window_bounds = array<i64: 1, 2, 4>}, {pipeline_mode = #tpu.pipeline_mode<synchronous>, transform_indices = @transform_1, window_bounds = array<i64: 2, 32>}, {pipeline_mode = #tpu.pipeline_mode<synchronous>, transform_indices = @transform_2, window_bounds = array<i64: 4, 64>}, {pipeline_mode = #tpu.pipeline_mode<synchronous>, transform_indices = @transform_3, window_bounds = array<i64: 32, 64>}, {pipeline_mode = #tpu.pipeline_mode<synchronous>, transform_indices = @transform_4, window_bounds = array<i64: 1, 64>}, {pipeline_mode = #tpu.pipeline_mode<synchronous>, transform_indices = @transform_5, window_bounds = array<i64: 1, 64>}, {transform_indices = @transform_6, window_bounds = array<i64: 1, 1>}, {transform_indices = @transform_7, window_bounds = array<i64: 1, 2, 1>}, {transform_indices = @transform_8, window_bounds = array<i64: 1, 2, 32>}]} {
    %c0_i32 = arith.constant 0 : i32
    %0 = arith.cmpi eq, %arg0, %c0_i32 : i32
    %1 = arith.extui %0 : i1 to i32
    %c0_i32_0 = arith.constant 0 : i32
    %2 = arith.cmpi ne, %1, %c0_i32_0 : i32
    scf.if %2 {
      %c0_27 = arith.constant 0 : index
      %c0_28 = arith.constant 0 : index
      %37 = vector.load %arg2[%c0_27, %c0_28] : memref<2x32xf32, #tpu.memory_space<vmem>>, vector<2x32xf32>
      %c0_29 = arith.constant 0 : index
      %c0_30 = arith.constant 0 : index
      %38 = vector.load %arg10[%c0_29, %c0_30] : memref<2x32xf32, #tpu.memory_space<vmem>>, vector<2x32xf32>
      tpu.vector_store %arg10[%c0_29, %c0_30], %37 {strides = array<i32>} : memref<2x32xf32, #tpu.memory_space<vmem>>, vector<2x32xf32>,
    } else {
    }
    %c0 = arith.constant 0 : index
    %c0_1 = arith.constant 0 : index
    %c0_2 = arith.constant 0 : index
    %3 = vector.load %arg1[%c0, %c0_1, %c0_2] : memref<1x2x4xf32, #tpu.memory_space<vmem>>, vector<1x2x4xf32>
    %4 = vector.shape_cast %3 : vector<1x2x4xf32> to vector<2x4xf32>
    %c0_3 = arith.constant 0 : index
    %c0_4 = arith.constant 0 : index
    %5 = vector.load %arg10[%c0_3, %c0_4] : memref<2x32xf32, #tpu.memory_space<vmem>>, vector<2x32xf32>
    %c0_5 = arith.constant 0 : index
    %c0_6 = arith.constant 0 : index
    %6 = vector.load %arg3[%c0_5, %c0_6] : memref<4x64xf32, #tpu.memory_space<vmem>>, vector<4x64xf32>
    %cst = arith.constant dense<0.000000e+00> : vector<2x64xf32>
    %7 = tpu.matmul %4, %6, %cst {dimension_numbers = #tpu.dot_dimension_numbers<[1], [0], [0], [1], [0, 0, 1, 1], [], []>} : vector<2x4xf32>, vector<4x64xf32>, vector<2x64xf32> -> vector<2x64xf32>
    %c0_7 = arith.constant 0 : index
    %c0_8 = arith.constant 0 : index
    %8 = vector.load %arg4[%c0_7, %c0_8] : memref<32x64xf32, #tpu.memory_space<vmem>>, vector<32x64xf32>
    %cst_9 = arith.constant dense<0.000000e+00> : vector<2x64xf32>
    %9 = tpu.matmul %5, %8, %cst_9 {dimension_numbers = #tpu.dot_dimension_numbers<[1], [0], [0], [1], [0, 0, 1, 1], [], []>} : vector<2x32xf32>, vector<32x64xf32>, vector<2x64xf32> -> vector<2x64xf32>
    %10 = arith.addf %7, %9 : vector<2x64xf32>
    %c0_10 = arith.constant 0 : index
    %c0_11 = arith.constant 0 : index
    %11 = vector.load %arg6[%c0_10, %c0_11] : memref<1x64xf32, #tpu.memory_space<vmem>>, vector<1x64xf32>
    %12 = vector.broadcast %11 : vector<1x64xf32> to vector<2x64xf32>
    %13 = arith.addf %10, %12 : vector<2x64xf32>
    %cst_12 = arith.constant 0.000000e+00 : f32
    %14 = vector.broadcast %cst_12 : f32 to vector<2x64xf32>
    %15 = arith.maximumf %13, %14 : vector<2x64xf32>
    %16 = vector.extract_strided_slice %15 {offsets = [0, 0], sizes = [2, 32], strides = [1, 1]} : vector<2x64xf32> to vector<2x32xf32>
    %c0_13 = arith.constant 0 : index
    %c0_14 = arith.constant 0 : index
    %17 = vector.load %arg5[%c0_13, %c0_14] : memref<1x64xf32, #tpu.memory_space<vmem>>, vector<1x64xf32>
    %18 = vector.broadcast %17 : vector<1x64xf32> to vector<2x64xf32>
    %19 = arith.mulf %15, %18 : vector<2x64xf32>
    %cst_15 = arith.constant dense<0.000000e+00> : vector<2xf32>
    %20 = vector.multi_reduction <add>, %19, %cst_15 [1] : vector<2x64xf32> to vector<2xf32>
    %21 = vector.shape_cast %20 : vector<2xf32> to vector<2x1xf32>
    %c0_16 = arith.constant 0 : index
    %c0_17 = arith.constant 0 : index
    %22 = memref.load %arg7[%c0_16, %c0_17] : memref<1x1xf32, #tpu.memory_space<smem>>
    %23 = vector.broadcast %22 : f32 to vector<2x1xf32>
    %24 = arith.addf %21, %23 : vector<2x1xf32>
    %25 = arith.negf %24 : vector<2x1xf32>
    %26 = math.exp %25 : vector<2x1xf32>
    %cst_18 = arith.constant 1.000000e+00 : f32
    %27 = vector.broadcast %cst_18 : f32 to vector<2x1xf32>
    %28 = arith.addf %27, %26 : vector<2x1xf32>
    %29 = arith.divf %27, %28 : vector<2x1xf32>
    %c0_19 = arith.constant 0 : index
    %c0_20 = arith.constant 0 : index
    %30 = vector.load %arg10[%c0_19, %c0_20] : memref<2x32xf32, #tpu.memory_space<vmem>>, vector<2x32xf32>
    tpu.vector_store %arg10[%c0_19, %c0_20], %16 {strides = array<i32>} : memref<2x32xf32, #tpu.memory_space<vmem>>, vector<2x32xf32>,
    %c0_21 = arith.constant 0 : index
    %c0_22 = arith.constant 0 : index
    %c0_23 = arith.constant 0 : index
    %31 = vector.load %arg9[%c0_21, %c0_22, %c0_23] : memref<1x2x32xf32, #tpu.memory_space<vmem>>, vector<1x2x32xf32>
    %32 = vector.shape_cast %31 : vector<1x2x32xf32> to vector<2x32xf32>
    %33 = vector.shape_cast %16 : vector<2x32xf32> to vector<1x2x32xf32>
    tpu.vector_store %arg9[%c0_21, %c0_22, %c0_23], %33 {strides = array<i32>} : memref<1x2x32xf32, #tpu.memory_space<vmem>>, vector<1x2x32xf32>,
    %c0_24 = arith.constant 0 : index
    %c0_25 = arith.constant 0 : index
    %c0_26 = arith.constant 0 : index
    %34 = vector.load %arg8[%c0_24, %c0_25, %c0_26] : memref<1x2x1xf32, #tpu.memory_space<vmem>>, vector<1x2x1xf32>
    %35 = vector.shape_cast %34 : vector<1x2x1xf32> to vector<2x1xf32>
    %36 = vector.shape_cast %29 : vector<2x1xf32> to vector<1x2x1xf32>
    tpu.vector_store %arg8[%c0_24, %c0_25, %c0_26], %36 {strides = array<i32>} : memref<1x2x1xf32, #tpu.memory_space<vmem>>, vector<1x2x1xf32>,
    return
  }
  func.func @transform_0(%arg0: i32) -> (i32, i32, i32) {
    %c0_i32 = arith.constant 0 : i32
    %c0_i32_0 = arith.constant 0 : i32
    %c0_i32_1 = arith.constant 0 : i32
    return %arg0, %c0_i32, %c0_i32_0 : i32, i32, i32
  }
  func.func @transform_1(%arg0: i32) -> (i32, i32) {
    %c0_i32 = arith.constant 0 : i32
    %c0_i32_0 = arith.constant 0 : i32
    %c0_i32_1 = arith.constant 0 : i32
    return %c0_i32, %c0_i32_0 : i32, i32
  }
  func.func @transform_2(%arg0: i32) -> (i32, i32) {
    %c0_i32 = arith.constant 0 : i32
    %c0_i32_0 = arith.constant 0 : i32
    %c0_i32_1 = arith.constant 0 : i32
    return %c0_i32, %c0_i32_0 : i32, i32
  }
  func.func @transform_3(%arg0: i32) -> (i32, i32) {
    %c0_i32 = arith.constant 0 : i32
    %c0_i32_0 = arith.constant 0 : i32
    %c0_i32_1 = arith.constant 0 : i32
    return %c0_i32, %c0_i32_0 : i32, i32
  }
  func.func @transform_4(%arg0: i32) -> (i32, i32) {
    %c0_i32 = arith.constant 0 : i32
    %c0_i32_0 = arith.constant 0 : i32
    %c0_i32_1 = arith.constant 0 : i32
    return %c0_i32, %c0_i32_0 : i32, i32
  }
  func.func @transform_5(%arg0: i32) -> (i32, i32) {
    %c0_i32 = arith.constant 0 : i32
    %c0_i32_0 = arith.constant 0 : i32
    %c0_i32_1 = arith.constant 0 : i32
    return %c0_i32, %c0_i32_0 : i32, i32
  }
  func.func @transform_6(%arg0: i32) -> (i32, i32) {
    %c0_i32 = arith.constant 0 : i32
    %c0_i32_0 = arith.constant 0 : i32
    %c0_i32_1 = arith.constant 0 : i32
    return %c0_i32, %c0_i32_0 : i32, i32
  }
  func.func @transform_7(%arg0: i32) -> (i32, i32, i32) {
    %c0_i32 = arith.constant 0 : i32
    %c0_i32_0 = arith.constant 0 : i32
    %c0_i32_1 = arith.constant 0 : i32
    return %arg0, %c0_i32, %c0_i32_0 : i32, i32, i32
  }
  func.func @transform_8(%arg0: i32) -> (i32, i32, i32) {
    %c0_i32 = arith.constant 0 : i32
    %c0_i32_0 = arith.constant 0 : i32
    %c0_i32_1 = arith.constant 0 : i32
    return %arg0, %c0_i32, %c0_i32_0 : i32, i32, i32
  }
}

</mosaic_0001>

<llo_original>
// kernel: rnn_scan.1
$region0: #{rnn_scan.1}
  #allocation0 [shape = 'u32[]', space=smem, size = 0x4, offset = 0x4, fixed_abs, tag = 'smem constant byte address 0x4 - core index']
  #allocation1 [shape = 'u32[72,128]{1,0:T(1,128)}', space=vmem, size = 0x9000, scoped, tag = 'internal scratch']
  #allocation2 [shape = 'f32[2,32]{1,0:T(2,128)}', space=vmem, size = 0x400, scoped, tag = 'scratch operand']
  #allocation3 [shape = 'f32[1,1]{1,0:T(1,128)S(6)}', space=smem, size = 0x200, scoped, tag = 'scoped memory for rnn_scan.1']
  %s0 = inlined_call_operand.vmem [shape: f32[8,2,4], index: 0, kind: input, shape index: {}]
  %s1 = inlined_call_operand.vmem [shape: f32[2,32], index: 1, kind: input, shape index: {}]
  %s2 = inlined_call_operand.vmem [shape: f32[4,64], index: 2, kind: input, shape index: {}]
  %s3 = inlined_call_operand.hbm [shape: f32[32,64], index: 3, kind: input, shape index: {}]
  %s4 = inlined_call_operand.vmem [shape: f32[1,64], index: 4, kind: input, shape index: {}]
  %s5 = inlined_call_operand.vmem [shape: f32[1,64], index: 5, kind: input, shape index: {}]
  %s6 = inlined_call_operand.<no memory space> [shape: f32[1,1], index: 6, kind: input, shape index: {}]
  %s7 = inlined_call_operand.vmem [shape: f32[8,2,1], index: 7, kind: output, shape index: {0}]
  %s8 = inlined_call_operand.hbm [shape: f32[8,2,32], index: 8, kind: output, shape index: {1}]
  %9 = xla_tuple %s7, %s8
  %s10 = sld [smem:[#allocation0]]
  $region77: #{rnn_scan.1} parent=0
    _
  %s12 = ssub.s32 1, %s10
  %s13 = scalar_select 0, %s12, %s10
  %14 = sst [smem:[#allocation3]] %s6
  $region1: #{rnn_scan.1} parent=0
    #allocation4 [shape = 'u8[16384]{0}', space=vmem, size = 0x4000, scoped, tag = 'input window, operand 3, single buffered']
    #allocation5 [shape = 's32[2]{0}', space=sflag, size = 0x8, scoped, tag = 'scoped memory for rnn_scan.1']
    #allocation6 [shape = 's32[2]{0}', space=sflag, size = 0x8, scoped, tag = 'scoped memory for rnn_scan.1']
    #allocation7 [shape = 'u8[2048]{0}', space=vmem, size = 0x800, scoped, tag = 'output window, operand 1']
    %15 = vsyncpa [#allocation5], 0
    %16 = vsyncpa [#allocation6], 0
    %s17 = scalar_lea.sflag [#allocation6], 1
    %18 = vsyncpa %s17, 0
    loop: start=0, step=1, limit=10
    $region2: #{rnn_scan.1} parent=1 // loop_pre_header
      _
    $region3: #{rnn_scan.1} parent=1 // loop_header
      %s20 = sphi 0, %s24
      %p21 = scmp.ge.s32.totalorder %s20, 10
      %s30 = sphi 0, %s32
      %s33 = sphi 0, %s30
      %s34 = sphi 0, %s33
      %s50 = sphi 0, %s34
      %s54 = sphi 0, %s54
      %s56 = sphi 0, %s54
      %s57 = sphi 0, %s56
      %s71 = sphi 0, %s57
      %s75 = sphi 0, %s75
      %s77 = sphi 0, %s75
      %s78 = sphi 0, %s77
      %s92 = sphi 0, %s78
      %s96 = sphi 0, %s96
      %s98 = sphi 0, %s96
      %s99 = sphi 0, %s98
      %s113 = sphi 0, %s99
      %s117 = sphi 0, %s117
      %s119 = sphi 0, %s117
      %s120 = sphi 0, %s119
      %s134 = sphi 0, %s120
      %s138 = sphi 0, %s138
      %s140 = sphi 0, %s138
      %s141 = sphi 0, %s140
      %s155 = sphi 0, %s141
      %s159 = sphi 0, %s159
      %s161 = sphi 0, %s159
      %s162 = sphi 0, %s161
      %s176 = sphi 0, %s162
      %s182 = sphi 0, %s184
      %s185 = sphi 0, %s182
      %s186 = sphi 0, %s185
      %s202 = sphi 0, %s186
      %s208 = sphi 0, %s210
      %s211 = sphi 0, %s208
      %s212 = sphi 0, %s211
      %s228 = sphi 0, %s212
    $region4: #{rnn_scan.1} parent=1 // loop_header_branch
      %23 = sbr.rel (%p21) target = $region8
    $region5: #{rnn_scan.1} parent=1 // loop_body
      %s25 = ssub.s32 %s20, 1
      %s26 = ssub.s32 %s20, 2
      %s27 = sadd.s32 %s20, 1
      %s28 = ssub.s32 %s20, %s27
      %p29 = scmp.eq.s32.totalorder %s28, 0
      %s31 = sadd.s32 %s30, 1
      %s32 = scalar_select %p29, %s30, %s31
      %p35 = pneg %p29
      %p36 = scmp.eq.s32.totalorder %s20, 7
      %p37 = por %p35, %p36
      %p38 = scmp.ne.s32.totalorder %s30, %s33
      %p39 = scmp.eq.s32.totalorder %s20, 0
      %p40 = por %p38, %p39
      %p41 = scmp.ne.s32.totalorder %s30, %s33
      %p42 = scmp.eq.s32.totalorder %s25, 7
      %p43 = por %p41, %p42
      %p44 = scmp.ne.s32.totalorder %s33, %s34
      %p45 = scmp.eq.s32.totalorder %s25, 0
      %p46 = por %p44, %p45
      %p47 = scmp.ne.s32.totalorder %s33, %s34
      %p48 = scmp.eq.s32.totalorder %s26, 7
      %p49 = por %p47, %p48
      %p51 = scmp.ne.s32.totalorder %s34, %s50
      %p52 = scmp.eq.s32.totalorder %s26, 0
      %p53 = por %p51, %p52
      %s55 = sadd.s32 %s54, 1
      %p58 = scmp.eq.s32.totalorder %s20, 7
      %p59 = scmp.ne.s32.totalorder %s54, %s56
      %p60 = scmp.eq.s32.totalorder %s20, 0
      %p61 = por %p59, %p60
      %p62 = scmp.ne.s32.totalorder %s54, %s56
      %p63 = scmp.eq.s32.totalorder %s25, 7
      %p64 = por %p62, %p63
      %p65 = scmp.ne.s32.totalorder %s56, %s57
      %p66 = scmp.eq.s32.totalorder %s25, 0
      %p67 = por %p65, %p66
      %p68 = scmp.ne.s32.totalorder %s56, %s57
      %p69 = scmp.eq.s32.totalorder %s26, 7
      %p70 = por %p68, %p69
      %p72 = scmp.ne.s32.totalorder %s57, %s71
      %p73 = scmp.eq.s32.totalorder %s26, 0
      %p74 = por %p72, %p73
      %s76 = sadd.s32 %s75, 1
      %p79 = scmp.eq.s32.totalorder %s20, 7
      %p80 = scmp.ne.s32.totalorder %s75, %s77
      %p81 = scmp.eq.s32.totalorder %s20, 0
      %p82 = por %p80, %p81
      %p83 = scmp.ne.s32.totalorder %s75, %s77
      %p84 = scmp.eq.s32.totalorder %s25, 7
      %p85 = por %p83, %p84
      %p86 = scmp.ne.s32.totalorder %s77, %s78
      %p87 = scmp.eq.s32.totalorder %s25, 0
      %p88 = por %p86, %p87
      %p89 = scmp.ne.s32.totalorder %s77, %s78
      %p90 = scmp.eq.s32.totalorder %s26, 7
      %p91 = por %p89, %p90
      %p93 = scmp.ne.s32.totalorder %s78, %s92
      %p94 = scmp.eq.s32.totalorder %s26, 0
      %p95 = por %p93, %p94
      %s97 = sadd.s32 %s96, 1
      %p100 = scmp.eq.s32.totalorder %s20, 7
      %p101 = scmp.ne.s32.totalorder %s96, %s98
      %p102 = scmp.eq.s32.totalorder %s20, 0
      %p103 = por %p101, %p102
      %p104 = scmp.ne.s32.totalorder %s96, %s98
      %p105 = scmp.eq.s32.totalorder %s25, 7
      %p106 = por %p104, %p105
      %p107 = scmp.ne.s32.totalorder %s98, %s99
      %p108 = scmp.eq.s32.totalorder %s25, 0
      %p109 = por %p107, %p108
      %p110 = scmp.ne.s32.totalorder %s98, %s99
      %p111 = scmp.eq.s32.totalorder %s26, 7
      %p112 = por %p110, %p111
      %p114 = scmp.ne.s32.totalorder %s99, %s113
      %p115 = scmp.eq.s32.totalorder %s26, 0
      %p116 = por %p114, %p115
      %s118 = sadd.s32 %s117, 1
      %p121 = scmp.eq.s32.totalorder %s20, 7
      %p122 = scmp.ne.s32.totalorder %s117, %s119
      %p123 = scmp.eq.s32.totalorder %s20, 0
      %p124 = por %p122, %p123
      %p125 = scmp.ne.s32.totalorder %s117, %s119
      %p126 = scmp.eq.s32.totalorder %s25, 7
      %p127 = por %p125, %p126
      %p128 = scmp.ne.s32.totalorder %s119, %s120
      %p129 = scmp.eq.s32.totalorder %s25, 0
      %p130 = por %p128, %p129
      %p131 = scmp.ne.s32.totalorder %s119, %s120
      %p132 = scmp.eq.s32.totalorder %s26, 7
      %p133 = por %p131, %p132
      %p135 = scmp.ne.s32.totalorder %s120, %s134
      %p136 = scmp.eq.s32.totalorder %s26, 0
      %p137 = por %p135, %p136
      %s139 = sadd.s32 %s138, 1
      %p142 = scmp.eq.s32.totalorder %s20, 7
      %p143 = scmp.ne.s32.totalorder %s138, %s140
      %p144 = scmp.eq.s32.totalorder %s20, 0
      %p145 = por %p143, %p144
      %p146 = scmp.ne.s32.totalorder %s138, %s140
      %p147 = scmp.eq.s32.totalorder %s25, 7
      %p148 = por %p146, %p147
      %p149 = scmp.ne.s32.totalorder %s140, %s141
      %p150 = scmp.eq.s32.totalorder %s25, 0
      %p151 = por %p149, %p150
      %p152 = scmp.ne.s32.totalorder %s140, %s141
      %p153 = scmp.eq.s32.totalorder %s26, 7
      %p154 = por %p152, %p153
      %p156 = scmp.ne.s32.totalorder %s141, %s155
      %p157 = scmp.eq.s32.totalorder %s26, 0
      %p158 = por %p156, %p157
      %s160 = sadd.s32 %s159, 1
      %p163 = scmp.eq.s32.totalorder %s20, 7
      %p164 = scmp.ne.s32.totalorder %s159, %s161
      %p165 = scmp.eq.s32.totalorder %s20, 0
      %p166 = por %p164, %p165
      %p167 = scmp.ne.s32.totalorder %s159, %s161
      %p168 = scmp.eq.s32.totalorder %s25, 7
      %p169 = por %p167, %p168
      %p170 = scmp.ne.s32.totalorder %s161, %s162
      %p171 = scmp.eq.s32.totalorder %s25, 0
      %p172 = por %p170, %p171
      %p173 = scmp.ne.s32.totalorder %s161, %s162
      %p174 = scmp.eq.s32.totalorder %s26, 7
      %p175 = por %p173, %p174
      %p177 = scmp.ne.s32.totalorder %s162, %s176
      %p178 = scmp.eq.s32.totalorder %s26, 0
      %p179 = por %p177, %p178
      %s180 = ssub.s32 %s20, %s27
      %p181 = scmp.eq.s32.totalorder %s180, 0
      %s183 = sadd.s32 %s182, 1
      %s184 = scalar_select %p181, %s182, %s183
      %p187 = pneg %p181
      %p188 = scmp.eq.s32.totalorder %s20, 7
      %p189 = por %p187, %p188
      %p190 = scmp.ne.s32.totalorder %s182, %s185
      %p191 = scmp.eq.s32.totalorder %s20, 0
      %p192 = por %p190, %p191
      %p193 = scmp.ne.s32.totalorder %s182, %s185
      %p194 = scmp.eq.s32.totalorder %s25, 7
      %p195 = por %p193, %p194
      %p196 = scmp.ne.s32.totalorder %s185, %s186
      %p197 = scmp.eq.s32.totalorder %s25, 0
      %p198 = por %p196, %p197
      %p199 = scmp.ne.s32.totalorder %s185, %s186
      %p200 = scmp.eq.s32.totalorder %s26, 7
      %p201 = por %p199, %p200
      %p203 = scmp.ne.s32.totalorder %s186, %s202
      %p204 = scmp.eq.s32.totalorder %s26, 0
      %p205 = por %p203, %p204
      %s206 = ssub.s32 %s20, %s27
      %p207 = scmp.eq.s32.totalorder %s206, 0
      %s209 = sadd.s32 %s208, 1
      %s210 = scalar_select %p207, %s208, %s209
      %p213 = pneg %p207
      %p214 = scmp.eq.s32.totalorder %s20, 7
      %p215 = por %p213, %p214
      %p216 = scmp.ne.s32.totalorder %s208, %s211
      %p217 = scmp.eq.s32.totalorder %s20, 0
      %p218 = por %p216, %p217
      %p219 = scmp.ne.s32.totalorder %s208, %s211
      %p220 = scmp.eq.s32.totalorder %s25, 7
      %p221 = por %p219, %p220
      %p222 = scmp.ne.s32.totalorder %s211, %s212
      %p223 = scmp.eq.s32.totalorder %s25, 0
      %p224 = por %p222, %p223
      %p225 = scmp.ne.s32.totalorder %s211, %s212
      %p226 = scmp.eq.s32.totalorder %s26, 7
      %p227 = por %p225, %p226
      %p229 = scmp.ne.s32.totalorder %s212, %s228
      %p230 = scmp.eq.s32.totalorder %s26, 0
      %p231 = por %p229, %p230
      %p232 = scmp.le.s32.totalorder 1, %s20
      %p233 = scmp.lt.s32.totalorder %s20, 9
      %p234 = pnand %p232, %p233
      %p235 = pneg %p234
      // Predicated region
      $region9: #{rnn_scan.1} parent=5 // pred_check
        _
      $region10: #{rnn_scan.1} parent=5 // pred_check_branch
        %237 = sbr.rel (%p234) target = $region12
      $region11: #{rnn_scan.1} parent=5 // pred_region
        %s238 = ssub.s32 %s20, 1
        // Predicated region
        $region13: #{rnn_scan.1} parent=11 // pred_check
          %p239 = pneg %p67
        $region14: #{rnn_scan.1} parent=11 // pred_check_branch
          %241 = sbr.rel (%p239) target = $region16
        $region15: #{rnn_scan.1} parent=11 // pred_region
          _
        $region16: #{rnn_scan.1} parent=11 // pred_fallthru
          _
        // Predicated region
        $region17: #{rnn_scan.1} parent=11 // pred_check
          %p242 = pneg %p88
        $region18: #{rnn_scan.1} parent=11 // pred_check_branch
          %244 = sbr.rel (%p242) target = $region20
        $region19: #{rnn_scan.1} parent=11 // pred_region
          _
        $region20: #{rnn_scan.1} parent=11 // pred_fallthru
          _
        // Predicated region
        $region21: #{rnn_scan.1} parent=11 // pred_check
          %p245 = pneg %p109
        $region22: #{rnn_scan.1} parent=11 // pred_check_branch
          %247 = sbr.rel (%p245) target = $region24
        $region23: #{rnn_scan.1} parent=11 // pred_region
          %249 = vsyncadd [#allocation5], 0
          %s250 = sshll.u32 %s3, 4
          %s251 = int_to_ptr.hbm [resolvable:$true] %s250
          %s252 = sshll.u32 [#allocation4], 4
          %s253 = int_to_ptr.vmem [resolvable:$true] %s252
          %258 = dma.hbm_to_vmem [thread:$0]  %s251, 512, %s253, [#allocation5], 128, 128, 8
        $region24: #{rnn_scan.1} parent=11 // pred_fallthru
          _
        // Predicated region
        $region25: #{rnn_scan.1} parent=11 // pred_check
          %p259 = pneg %p130
        $region26: #{rnn_scan.1} parent=11 // pred_check_branch
          %261 = sbr.rel (%p259) target = $region28
        $region27: #{rnn_scan.1} parent=11 // pred_region
          _
        $region28: #{rnn_scan.1} parent=11 // pred_fallthru
          _
        // Predicated region
        $region29: #{rnn_scan.1} parent=11 // pred_check
          %p262 = pneg %p151
        $region30: #{rnn_scan.1} parent=11 // pred_check_branch
          %264 = sbr.rel (%p262) target = $region32
        $region31: #{rnn_scan.1} parent=11 // pred_region
          _
        $region32: #{rnn_scan.1} parent=11 // pred_fallthru
          _
        // Predicated region
        $region33: #{rnn_scan.1} parent=11 // pred_check
          %p265 = pneg %p172
        $region34: #{rnn_scan.1} parent=11 // pred_check_branch
          %267 = sbr.rel (%p265) target = $region36
        $region35: #{rnn_scan.1} parent=11 // pred_region
          _
        $region36: #{rnn_scan.1} parent=11 // pred_fallthru
          _
      $region12: #{rnn_scan.1} parent=5 // pred_fallthru
        _
      %p268 = scmp.lt.s32.totalorder %s20, 8
      // Predicated region
      $region37: #{rnn_scan.1} parent=5 // pred_check
        %p269 = pneg %p268
      $region38: #{rnn_scan.1} parent=5 // pred_check_branch
        %271 = sbr.rel (%p269) target = $region40
      $region39: #{rnn_scan.1} parent=5 // pred_region
        // Predicated region
        $region41: #{rnn_scan.1} parent=39 // pred_check
          %p272 = pneg %p40
        $region42: #{rnn_scan.1} parent=39 // pred_check_branch
          %274 = sbr.rel (%p272) target = $region44
        $region43: #{rnn_scan.1} parent=39 // pred_region
          %p275 = scmp.lt.s32.totalorder %s20, 7
          %s276 = scalar_select %p275, %s20, 7
          %s277 = smul.addr %s276, 2
          %s278 = scalar_lea.vmem %s0, %s277
        $region44: #{rnn_scan.1} parent=39 // pred_fallthru
          _
      $region40: #{rnn_scan.1} parent=5 // pred_fallthru
        _
      %p279 = scmp.le.s32.totalorder 1, %s20
      %p280 = scmp.lt.s32.totalorder %s20, 9
      %p281 = pnand %p279, %p280
      %p282 = pneg %p281
      // Predicated region
      $region45: #{rnn_scan.1} parent=5 // pred_check
        _
      $region46: #{rnn_scan.1} parent=5 // pred_check_branch
        %284 = sbr.rel (%p281) target = $region48
      $region47: #{rnn_scan.1} parent=5 // pred_region
        %s285 = ssub.s32 %s20, 1
        // Predicated region
        $region49: #{rnn_scan.1} parent=47 // pred_check
          %p286 = pneg %p109
        $region50: #{rnn_scan.1} parent=47 // pred_check_branch
          %288 = sbr.rel (%p286) target = $region52
        $region51: #{rnn_scan.1} parent=47 // pred_region
          %290 = dma.done [#allocation5], 512
        $region52: #{rnn_scan.1} parent=47 // pred_fallthru
          _
        %p291 = scmp.lt.s32.totalorder %s25, 7
        %s292 = scalar_select %p291, %s25, 7
        %s293 = smul.addr %s292, 2
        %s294 = scalar_lea.vmem %s0, %s293
        %p295 = pneg %p46
        %p296 = pneg %p43
        %p297 = pneg %p67
        %p298 = pneg %p64
        %p299 = pneg %p88
        %p300 = pneg %p85
        %p301 = pneg %p109
        %p302 = pneg %p106
        %p303 = pneg %p130
        %p304 = pneg %p127
        %p305 = pneg %p151
        %p306 = pneg %p148
        %p307 = pneg %p172
        %p308 = pneg %p169
        %p309 = pneg %p198
        %p310 = pneg %p195
        %p311 = scmp.lt.s32.totalorder %s25, 7
        %s312 = scalar_select %p311, %s25, 7
        %s313 = smul.addr %s312, 2
        %s314 = scalar_lea.vmem %s7, %s313
        %p315 = pneg %p224
        %p316 = pneg %p221
        %s317 = sand.u32 %s211, 1
        %s318 = scalar_lea.sflag [#allocation6], %s317
        %s319 = sand.u32 %s211, 1
        %s320 = smul.addr %s319, 2
        %s321 = scalar_lea.vmem [#allocation7], %s320
        %p322 = scmp.lt.s32.totalorder %s25, 7
        %s323 = scalar_select %p322, %s25, 7
        %s324 = smul.addr %s323, 2
        %s325 = scalar_lea.vmem %s0, %s324
        %p326 = scmp.lt.s32.totalorder %s25, 7
        %s327 = scalar_select %p326, %s25, 7
        %s328 = smul.addr %s327, 2
        %s329 = scalar_lea.vmem %s7, %s328
        %p330 = scmp.eq.s32.totalorder %s25, 0
        // Predicated region
        $region53: #{rnn_scan.1} parent=47 // pred_check
          %p331 = pneg %p330
        $region54: #{rnn_scan.1} parent=47 // pred_check_branch
          %333 = sbr.rel (%p331) target = $region56
        $region55: #{rnn_scan.1} parent=47 // pred_region
          %v334 = vld [vmem:[%s1] sm:$0x3]
          %vm335 = vcmask 254976
          %336 = vst.msk [vmem:[#allocation2] sm:$0x3] %vm335, %v334
        $region56: #{rnn_scan.1} parent=47 // pred_fallthru
          _
        %v337 = vld [vmem:[%s325] sm:$0x3]
        %v338 = vld [vmem:[#allocation2] sm:$0x3]
        %v339 = vld [vmem:[%s2] sm:$0xf]
        %v340 = vld [vmem:[#allocation4] sm:$0xff]
        %v341 = vld [vmem:[#allocation4 + $0x8] sm:$0xff]
        %v342 = vld [vmem:[#allocation4 + $0x10] sm:$0xff]
        %v343 = vld [vmem:[#allocation4 + $0x18] sm:$0xff]
        %vm344 = vcmask 261120
        %v346 = vsel %vm344, %v338, 0
        %348 = vmatpush.msra.mxu0 0.0
        %349 = vmatpush.msra.mxu0 0.0
        %350 = vmatpush.msra.mxu0 0.0
        %351 = vmatpush.msra.mxu0 0.0
        %352 = vmatpush.msra.mxu0 0.0
        %353 = vmatpush.msra.mxu0 0.0
        %354 = vmatpush.msra.mxu0 0.0
        %355 = vmatpush.msra.mxu0 0.0
        %356 = vmatpush.msra.mxu0 0.0
        %357 = vmatpush.msra.mxu0 0.0
        %358 = vmatpush.msra.mxu0 0.0
        %359 = vmatpush.msra.mxu0 0.0
        %360 = vmatpush.msra.mxu0 %v343
        %361 = vmatpush.msra.mxu0 %v342
        %362 = vmatpush.msra.mxu0 %v341
        %363 = vmatpush.msra.mxu0 %v340
        %364 = vmatmul.f32.gmra.mxu0 %v346
        %v365 = vpop.f32.mrf.mxu0
        %v366 = vadd.f32 0.0, %v365
        %367 = vdwg.mxu0
        %vm368 = vcmask 31744
        %v370 = vsel %vm368, %v337, 0
        %vm372 = vcmask 1043456
        %v374 = vsel %vm372, %v339, 0
        %376 = vmatpush.msra.mxu0 0.0
        %377 = vmatpush.msra.mxu0 0.0
        %378 = vmatpush.msra.mxu0 0.0
        %379 = vmatpush.msra.mxu0 0.0
        %380 = vmatpush.msra.mxu0 0.0
        %381 = vmatpush.msra.mxu0 0.0
        %382 = vmatpush.msra.mxu0 0.0
        %383 = vmatpush.msra.mxu0 0.0
        %384 = vmatpush.msra.mxu0 0.0
        %385 = vmatpush.msra.mxu0 0.0
        %386 = vmatpush.msra.mxu0 0.0
        %387 = vmatpush.msra.mxu0 0.0
        %388 = vmatpush.msra.mxu0 0.0
        %389 = vmatpush.msra.mxu0 0.0
        %390 = vmatpush.msra.mxu0 0.0
        %391 = vmatpush.msra.mxu0 %v374
        %392 = vmatmul.f32.gmra.mxu0 %v370
        %v393 = vpop.f32.mrf.mxu0
        %v394 = vadd.f32 %v366, %v393
        %395 = vdwg.mxu0
        %v396 = vld [vmem:[%s5] sm:$0x1]
        %v398 = vperm.slane %v396, 0
        %v400 = vadd.f32 %v394, %v398
        %v401 = vmax.f32 %v400, 0.0
        %v402 = vld [vmem:[%s4] sm:$0x1]
        %v404 = vperm.slane %v402, 0
        %v406 = vmul.f32 %v401, %v404
        %vm407 = vcmask 517120
        %v408 = vsel %vm407, %v406, 0.0
        %409 = vadd.xlane.f32.xlu0 %v408
        %v410 = vpop.xlane.xlu0 %409
        %s411 = sld [smem:[#allocation3]]
        %v412 = vstv %s411
        %v413 = vadd.f32 %v410, %v412
        %v414 = vxor.u32 %v413, 2147483648
        %v415 = vmul.f32 %v414, 1.442695
        %v416 = vpow.pop %v415
        %v417 = vadd.f32 %v416, 1.0
        %v418 = vrcp.pop %v417
        %v419 = vmul.f32 %v417, %v418
        %v420 = vsub.f32 1.0, %v419
        %v421 = vmul.f32 %v418, %v420
        %v422 = vadd.f32 %v418, %v421
        %vm423 = vweird.f32 %v417
        %vm424 = vweird.f32 %v418
        %vm425 = vmor %vm423, %vm424
        %v426 = vsel %vm425, %v418, %v422
        %v427 = vand.u32 2147483647, %v417
        %vm428 = vcmp.eq.f32.partialorder %v427, 8.507059e+37
        %v429 = vand.u32 %v417, 2147483648
        %v430 = vor.u32 1.1754944e-38, %v429
        %v431 = vsel %vm428, %v430, %v426
        %v432 = vmul.f32 1.0, %v431
        %vm433 = vcmask 254976
        %434 = vst.msk [vmem:[#allocation2] sm:$0x3] %vm433, %v401
        %435 = vst.msk [vmem:[%s321] sm:$0x3] %vm433, %v401
        %vm436 = vcmask 1024
        %437 = vst.msk [vmem:[%s329] sm:$0x3] %vm436, %v432
        %p438 = scmp.lt.s32.totalorder %s25, 7
        %s439 = scalar_select %p438, %s25, 7
        %s440 = smul.addr %s439, 2
        %s441 = scalar_lea.vmem %s7, %s440
        %s442 = sand.u32 %s211, 1
        %s443 = scalar_lea.sflag [#allocation6], %s442
        %s444 = sand.u32 %s211, 1
        %s445 = smul.addr %s444, 2
        %s446 = scalar_lea.vmem [#allocation7], %s445
        // Predicated region
        $region57: #{rnn_scan.1} parent=47 // pred_check
          %p447 = pneg %p195
        $region58: #{rnn_scan.1} parent=47 // pred_check_branch
          %449 = sbr.rel (%p447) target = $region60
        $region59: #{rnn_scan.1} parent=47 // pred_region
          _
        $region60: #{rnn_scan.1} parent=47 // pred_fallthru
          _
        // Predicated region
        $region61: #{rnn_scan.1} parent=47 // pred_check
          %p450 = pneg %p221
        $region62: #{rnn_scan.1} parent=47 // pred_check_branch
          %452 = sbr.rel (%p450) target = $region64
        $region63: #{rnn_scan.1} parent=47 // pred_region
          %454 = vsyncadd %s443, 0
          %s455 = smul.addr %s25, 2
          %s456 = scalar_lea.hbm %s8, %s455
          %s458 = sshll.u32 %s446, 4
          %s459 = int_to_ptr.vmem [resolvable:$true] %s458
          %s460 = sshll.u32 %s456, 4
          %s461 = int_to_ptr.hbm [resolvable:$true] %s460
          %463 = dma.vmem_to_hbm [thread:$0]  %s459, 32, %s461, %s443
        $region64: #{rnn_scan.1} parent=47 // pred_fallthru
          _
      $region48: #{rnn_scan.1} parent=5 // pred_fallthru
        _
      %p464 = scmp.le.s32.totalorder 2, %s20
      // Predicated region
      $region65: #{rnn_scan.1} parent=5 // pred_check
        %p465 = pneg %p464
      $region66: #{rnn_scan.1} parent=5 // pred_check_branch
        %467 = sbr.rel (%p465) target = $region68
      $region67: #{rnn_scan.1} parent=5 // pred_region
        %s468 = ssub.s32 %s20, 2
        // Predicated region
        $region69: #{rnn_scan.1} parent=67 // pred_check
          %p469 = pneg %p201
        $region70: #{rnn_scan.1} parent=67 // pred_check_branch
          %471 = sbr.rel (%p469) target = $region72
        $region71: #{rnn_scan.1} parent=67 // pred_region
          %p472 = scmp.lt.s32.totalorder %s26, 7
          %s473 = scalar_select %p472, %s26, 7
          %s474 = smul.addr %s473, 2
          %s475 = scalar_lea.vmem %s7, %s474
        $region72: #{rnn_scan.1} parent=67 // pred_fallthru
          _
        // Predicated region
        $region73: #{rnn_scan.1} parent=67 // pred_check
          %p476 = pneg %p227
        $region74: #{rnn_scan.1} parent=67 // pred_check_branch
          %478 = sbr.rel (%p476) target = $region76
        $region75: #{rnn_scan.1} parent=67 // pred_region
          %s479 = sand.u32 %s212, 1
          %s480 = scalar_lea.sflag [#allocation6], %s479
          %s481 = sand.u32 %s212, 1
          %s482 = smul.addr %s481, 2
          %s483 = scalar_lea.vmem [#allocation7], %s482
          %485 = dma.done %s480, 32
        $region76: #{rnn_scan.1} parent=67 // pred_fallthru
          _
      $region68: #{rnn_scan.1} parent=5 // pred_fallthru
        _
    $region6: #{rnn_scan.1} parent=1 // loop_footer
      %s24 = sadd.s32 1, %s20
    $region7: #{rnn_scan.1} parent=1 // loop_footer_branch
      %19 = sbr.rel target = $region3
    $region8: #{rnn_scan.1} parent=1 // loop_exit
      _
    %486 = vsyncpa [#allocation5], 1
    %s487 = scalar_lea.sflag [#allocation5], 1
    %488 = vsyncpa %s487, 1
    %489 = vsyncpa [#allocation6], 1
    %s490 = scalar_lea.sflag [#allocation6], 1
    %491 = vsyncpa %s490, 1

</llo_original>
